<compile_context>
chip_gen: v7x
topology: tpu7x:2x2x1
jax: 0.10.0
libtpu: 0.0.40
codegen_flags: <defaults>
</compile_context>

<pallas_src>
import jax
import jax.numpy as jnp
from jax.experimental import pallas as pl
from jax.experimental.pallas import tpu as pltpu

EPS = 1e-5
LANE = 128


def _round_up(x, m):
    return (x + m - 1) // m * m


def batch_net_kernel(x_ref,
                     w1_ref, g1_ref, be1_ref,
                     w2_ref, g2_ref, be2_ref,
                     w3_ref, b3_ref,
                     o_ref):
    inv_b = jnp.float32(1.0 / x_ref.shape[0])

    def bn_relu(h, g, be):
        # Training-mode BatchNorm, two-pass batch statistics (robust, no concat/relayout):
        # two sublane (XLU) reductions + cheap VPU passes; rsqrt goes to the EUP slot.
        m = jnp.sum(h, axis=0, keepdims=True) * inv_b
        c = h - m
        var = jnp.sum(c * c, axis=0, keepdims=True) * inv_b   # biased variance
        scale = g * jax.lax.rsqrt(var + EPS)                   # (1, n)
        return jnp.maximum(c * scale + be, 0.0)                # normalize + affine + ReLU

    # Cast x to bf16 in-kernel (VPU has slack; avoids a separate XLA convert op).
    x = x_ref[...].astype(jnp.bfloat16)

    # ---- layer 1: Linear (pre-BN bias dropped: inert under training-mode BN) ----
    h1 = jnp.dot(x, w1_ref[...], preferred_element_type=jnp.float32)
    h1 = bn_relu(h1, g1_ref[...], be1_ref[...])

    # ---- layer 2 ----
    h2 = jnp.dot(h1.astype(w2_ref.dtype), w2_ref[...],
                 preferred_element_type=jnp.float32)
    h2 = bn_relu(h2, g2_ref[...], be2_ref[...])

    # ---- layer 3: plain Linear, direct (B, out_dim) store ----
    out = jnp.dot(h2.astype(w3_ref.dtype), w3_ref[...],
                  preferred_element_type=jnp.float32) + b3_ref[...]
    o_ref[...] = out.astype(o_ref.dtype)


def prepare_params(params):
    """One-time parameter prep (call once, not per step):
      * drop pre-BN biases b1/b2 (cancelled exactly by training-mode BN mean subtraction)
      * zero-pad hidden feature dims to lane-dense 128; padded gamma=beta=0 so padded
        activations are exactly 0 and contribute nothing downstream
      * cast weight matrices to bf16 once (MXU operands); BN params / b3 stay f32
    """
    (w1, b1, g1, be1, w2, b2, g2, be2, w3, b3) = params
    del b1, b2

    in_dim, h1 = w1.shape
    _, h2 = w2.shape
    _, out_dim = w3.shape
    h1p = _round_up(h1, LANE)
    h2p = _round_up(h2, LANE)

    def pad2(a, rows, cols):
        out = jnp.zeros((rows, cols), a.dtype)
        return out.at[:a.shape[0], :a.shape[1]].set(a)

    w1p = pad2(w1, in_dim, h1p).astype(jnp.bfloat16)
    w2p = pad2(w2, h1p, h2p).astype(jnp.bfloat16)
    w3p = pad2(w3, h2p, out_dim).astype(jnp.bfloat16)
    g1p, be1p = pad2(g1, 1, h1p), pad2(be1, 1, h1p)
    g2p, be2p = pad2(g2, 1, h2p), pad2(be2, 1, h2p)

    return (w1p, g1p, be1p, w2p, g2p, be2p, w3p, b3)


@jax.jit
def batch_net_forward(x, prepared):
    (w1, g1, be1, w2, g2, be2, w3, b3) = prepared
    B, in_dim = x.shape
    h1p = w1.shape[1]
    h2p = w2.shape[1]
    out_dim = w3.shape[1]

    vmem = pl.BlockSpec(memory_space=pltpu.MemorySpace.VMEM)

    flops = 2 * B * (in_dim * h1p + h1p * h2p + h2p * out_dim)
    bytes_accessed = (4 * x.size
                      + 2 * (w1.size + w2.size + w3.size)        # bf16 weights
                      + 4 * (g1.size + be1.size + g2.size + be2.size + b3.size)
                      + 4 * B * out_dim)                          # f32 output

    # Single grid-less call: BatchNorm needs whole-batch statistics, so the batch must
    # live in one block. At these shapes (<1 MiB live) VMEM is a non-issue on all gens.
    # TODO(synk): if multiple independent micro-batches are run per step, add a leading
    # PARALLEL grid axis over them to use both TensorCores on v7x.
    return pl.pallas_call(
        batch_net_kernel,
        out_shape=jax.ShapeDtypeStruct((B, out_dim), jnp.float32),
        in_specs=[vmem] * 9,
        out_specs=vmem,
        cost_estimate=pl.CostEstimate(
            flops=flops, transcendentals=h1p + h2p,
            bytes_accessed=bytes_accessed),
    )(x, w1, g1, be1, w2, g2, be2, w3, b3)


def init_params(key, in_dim, n_hidden_1, n_hidden_2, out_dim):
    """PyTorch-default-style init (uniform Linear, gamma=1/beta=0 BatchNorm).
    Biases / BN params stored as (1, features)."""
    ks = jax.random.split(key, 6)

    def linear(kw, kb, fan_in, fan_out):
        bound = 1.0 / (fan_in ** 0.5)
        w = jax.random.uniform(kw, (fan_in, fan_out), jnp.float32, -bound, bound)
        b = jax.random.uniform(kb, (1, fan_out), jnp.float32, -bound, bound)
        return w, b

    w1, b1 = linear(ks[0], ks[1], in_dim, n_hidden_1)
    w2, b2 = linear(ks[2], ks[3], n_hidden_1, n_hidden_2)
    w3, b3 = linear(ks[4], ks[5], n_hidden_2, out_dim)

    g1 = jnp.ones((1, n_hidden_1), jnp.float32)
    be1 = jnp.zeros((1, n_hidden_1), jnp.float32)
    g2 = jnp.ones((1, n_hidden_2), jnp.float32)
    be2 = jnp.zeros((1, n_hidden_2), jnp.float32)

    return (w1, b1, g1, be1, w2, b2, g2, be2, w3, b3)


def reference_forward(x, params):
    """Pure-JAX reference of the same training-mode forward, mirroring the kernel's
    compute-dtype policy (bf16 MXU operands, f32 accumulation / BN math). Keeps the
    pre-BN biases to demonstrate they are mathematically inert under training-mode BN."""
    (w1, b1, g1, be1, w2, b2, g2, be2, w3, b3) = params

    def dot_bf16(a, w):
        return jnp.dot(a.astype(jnp.bfloat16), w.astype(jnp.bfloat16),
                       preferred_element_type=jnp.float32)

    def bn(h, g, be):
        m = jnp.mean(h, axis=0, keepdims=True)
        v = jnp.mean((h - m) ** 2, axis=0, keepdims=True)
        return (h - m) / jnp.sqrt(v + EPS) * g + be

    h1 = jnp.maximum(bn(dot_bf16(x, w1) + b1, g1, be1), 0.0)
    h2 = jnp.maximum(bn(dot_bf16(h1, w2) + b2, g2, be2), 0.0)
    return dot_bf16(h2, w3) + b3


if __name__ == "__main__":
    # Whole batch kept in one block: training-mode BatchNorm needs whole-batch statistics.
    B, in_dim, n_hidden_1, n_hidden_2, out_dim = 128, 32, 64, 64, 16

    key = jax.random.PRNGKey(0)
    kx, kp = jax.random.split(key)
    x = jax.random.normal(kx, (B, in_dim), dtype=jnp.float32)
    params = init_params(kp, in_dim, n_hidden_1, n_hidden_2, out_dim)
    prepared = prepare_params(params)   # one-time: pad + bf16-cast weights

    out = batch_net_forward(x, prepared)
    out = jax.block_until_ready(out)

    ref = reference_forward(x, params)
    assert out.shape == (B, out_dim)
    assert jnp.allclose(out, ref, atol=2e-3, rtol=2e-3), "mismatch vs. JAX reference"

    print("KERNEL_OK")
</pallas_src>

<mosaic_0001>
module attributes {stable_mosaic.version = 11 : i64} {
  func.func @batch_net_kernel(%arg0: memref<128x32xf32, #tpu.memory_space<vmem>>, %arg1: memref<32x128xbf16, #tpu.memory_space<vmem>>, %arg2: memref<1x128xf32, #tpu.memory_space<vmem>>, %arg3: memref<1x128xf32, #tpu.memory_space<vmem>>, %arg4: memref<128x128xbf16, #tpu.memory_space<vmem>>, %arg5: memref<1x128xf32, #tpu.memory_space<vmem>>, %arg6: memref<1x128xf32, #tpu.memory_space<vmem>>, %arg7: memref<128x16xbf16, #tpu.memory_space<vmem>>, %arg8: memref<1x16xf32, #tpu.memory_space<vmem>>, %arg9: memref<128x16xf32, #tpu.memory_space<vmem>>) attributes {dimension_semantics = [], scalar_prefetch = 0 : i64, scratch_operands = 0 : i64, tpu.core_type = #tpu.core_type<tc>} {
    %c0 = arith.constant 0 : index
    %c0_0 = arith.constant 0 : index
    %0 = vector.load %arg0[%c0, %c0_0] : memref<128x32xf32, #tpu.memory_space<vmem>>, vector<128x32xf32>
    %1 = arith.truncf %0 : vector<128x32xf32> to vector<128x32xbf16>
    %c0_1 = arith.constant 0 : index
    %c0_2 = arith.constant 0 : index
    %2 = vector.load %arg1[%c0_1, %c0_2] : memref<32x128xbf16, #tpu.memory_space<vmem>>, vector<32x128xbf16>
    %cst = arith.constant dense<0.000000e+00> : vector<128x128xf32>
    %3 = tpu.matmul %1, %2, %cst {dimension_numbers = #tpu.dot_dimension_numbers<[1], [0], [0], [1], [0, 0, 1, 1], [], []>} : vector<128x32xbf16>, vector<32x128xbf16>, vector<128x128xf32> -> vector<128x128xf32>
    %c0_3 = arith.constant 0 : index
    %c0_4 = arith.constant 0 : index
    %4 = vector.load %arg2[%c0_3, %c0_4] : memref<1x128xf32, #tpu.memory_space<vmem>>, vector<1x128xf32>
    %c0_5 = arith.constant 0 : index
    %c0_6 = arith.constant 0 : index
    %5 = vector.load %arg3[%c0_5, %c0_6] : memref<1x128xf32, #tpu.memory_space<vmem>>, vector<1x128xf32>
    %cst_7 = arith.constant dense<0.000000e+00> : vector<128xf32>
    %6 = vector.multi_reduction <add>, %3, %cst_7 [0] : vector<128x128xf32> to vector<128xf32>
    %7 = vector.shape_cast %6 : vector<128xf32> to vector<1x128xf32>
    %cst_8 = arith.constant 7.812500e-03 : f32
    %8 = vector.broadcast %cst_8 : f32 to vector<1x128xf32>
    %9 = arith.mulf %7, %8 : vector<1x128xf32>
    %10 = vector.broadcast %9 : vector<1x128xf32> to vector<128x128xf32>
    %11 = arith.subf %3, %10 : vector<128x128xf32>
    %12 = arith.mulf %11, %11 : vector<128x128xf32>
    %cst_9 = arith.constant dense<0.000000e+00> : vector<128xf32>
    %13 = vector.multi_reduction <add>, %12, %cst_9 [0] : vector<128x128xf32> to vector<128xf32>
    %14 = vector.shape_cast %13 : vector<128xf32> to vector<1x128xf32>
    %cst_10 = arith.constant 7.812500e-03 : f32
    %15 = vector.broadcast %cst_10 : f32 to vector<1x128xf32>
    %16 = arith.mulf %14, %15 : vector<1x128xf32>
    %cst_11 = arith.constant 9.99999974E-6 : f32
    %17 = vector.broadcast %cst_11 : f32 to vector<1x128xf32>
    %18 = arith.addf %16, %17 : vector<1x128xf32>
    %19 = math.rsqrt %18 : vector<1x128xf32>
    %20 = arith.mulf %4, %19 : vector<1x128xf32>
    %21 = vector.broadcast %20 : vector<1x128xf32> to vector<128x128xf32>
    %22 = arith.mulf %11, %21 : vector<128x128xf32>
    %23 = vector.broadcast %5 : vector<1x128xf32> to vector<128x128xf32>
    %24 = arith.addf %22, %23 : vector<128x128xf32>
    %cst_12 = arith.constant 0.000000e+00 : f32
    %25 = vector.broadcast %cst_12 : f32 to vector<128x128xf32>
    %26 = arith.maximumf %24, %25 : vector<128x128xf32>
    %27 = arith.truncf %26 : vector<128x128xf32> to vector<128x128xbf16>
    %c0_13 = arith.constant 0 : index
    %c0_14 = arith.constant 0 : index
    %28 = vector.load %arg4[%c0_13, %c0_14] : memref<128x128xbf16, #tpu.memory_space<vmem>>, vector<128x128xbf16>
    %cst_15 = arith.constant dense<0.000000e+00> : vector<128x128xf32>
    %29 = tpu.matmul %27, %28, %cst_15 {dimension_numbers = #tpu.dot_dimension_numbers<[1], [0], [0], [1], [0, 0, 1, 1], [], []>} : vector<128x128xbf16>, vector<128x128xbf16>, vector<128x128xf32> -> vector<128x128xf32>
    %c0_16 = arith.constant 0 : index
    %c0_17 = arith.constant 0 : index
    %30 = vector.load %arg5[%c0_16, %c0_17] : memref<1x128xf32, #tpu.memory_space<vmem>>, vector<1x128xf32>
    %c0_18 = arith.constant 0 : index
    %c0_19 = arith.constant 0 : index
    %31 = vector.load %arg6[%c0_18, %c0_19] : memref<1x128xf32, #tpu.memory_space<vmem>>, vector<1x128xf32>
    %cst_20 = arith.constant dense<0.000000e+00> : vector<128xf32>
    %32 = vector.multi_reduction <add>, %29, %cst_20 [0] : vector<128x128xf32> to vector<128xf32>
    %33 = vector.shape_cast %32 : vector<128xf32> to vector<1x128xf32>
    %cst_21 = arith.constant 7.812500e-03 : f32
    %34 = vector.broadcast %cst_21 : f32 to vector<1x128xf32>
    %35 = arith.mulf %33, %34 : vector<1x128xf32>
    %36 = vector.broadcast %35 : vector<1x128xf32> to vector<128x128xf32>
    %37 = arith.subf %29, %36 : vector<128x128xf32>
    %38 = arith.mulf %37, %37 : vector<128x128xf32>
    %cst_22 = arith.constant dense<0.000000e+00> : vector<128xf32>
    %39 = vector.multi_reduction <add>, %38, %cst_22 [0] : vector<128x128xf32> to vector<128xf32>
    %40 = vector.shape_cast %39 : vector<128xf32> to vector<1x128xf32>
    %cst_23 = arith.constant 7.812500e-03 : f32
    %41 = vector.broadcast %cst_23 : f32 to vector<1x128xf32>
    %42 = arith.mulf %40, %41 : vector<1x128xf32>
    %cst_24 = arith.constant 9.99999974E-6 : f32
    %43 = vector.broadcast %cst_24 : f32 to vector<1x128xf32>
    %44 = arith.addf %42, %43 : vector<1x128xf32>
    %45 = math.rsqrt %44 : vector<1x128xf32>
    %46 = arith.mulf %30, %45 : vector<1x128xf32>
    %47 = vector.broadcast %46 : vector<1x128xf32> to vector<128x128xf32>
    %48 = arith.mulf %37, %47 : vector<128x128xf32>
    %49 = vector.broadcast %31 : vector<1x128xf32> to vector<128x128xf32>
    %50 = arith.addf %48, %49 : vector<128x128xf32>
    %cst_25 = arith.constant 0.000000e+00 : f32
    %51 = vector.broadcast %cst_25 : f32 to vector<128x128xf32>
    %52 = arith.maximumf %50, %51 : vector<128x128xf32>
    %53 = arith.truncf %52 : vector<128x128xf32> to vector<128x128xbf16>
    %c0_26 = arith.constant 0 : index
    %c0_27 = arith.constant 0 : index
    %54 = vector.load %arg7[%c0_26, %c0_27] : memref<128x16xbf16, #tpu.memory_space<vmem>>, vector<128x16xbf16>
    %cst_28 = arith.constant dense<0.000000e+00> : vector<128x16xf32>
    %55 = tpu.matmul %53, %54, %cst_28 {dimension_numbers = #tpu.dot_dimension_numbers<[1], [0], [0], [1], [0, 0, 1, 1], [], []>} : vector<128x128xbf16>, vector<128x16xbf16>, vector<128x16xf32> -> vector<128x16xf32>
    %c0_29 = arith.constant 0 : index
    %c0_30 = arith.constant 0 : index
    %56 = vector.load %arg8[%c0_29, %c0_30] : memref<1x16xf32, #tpu.memory_space<vmem>>, vector<1x16xf32>
    %57 = vector.broadcast %56 : vector<1x16xf32> to vector<128x16xf32>
    %58 = arith.addf %55, %57 : vector<128x16xf32>
    %c0_31 = arith.constant 0 : index
    %c0_32 = arith.constant 0 : index
    %59 = vector.load %arg9[%c0_31, %c0_32] : memref<128x16xf32, #tpu.memory_space<vmem>>, vector<128x16xf32>
    tpu.vector_store %arg9[%c0_31, %c0_32], %58 {strides = array<i32>} : memref<128x16xf32, #tpu.memory_space<vmem>>, vector<128x16xf32>,
    return
  }
}

</mosaic_0001>

<llo_original>
// kernel: batch_net_forward.1
$region0: #{batch_net_forward.1}
  #allocation0 [shape = 'u32[]', space=smem, size = 0x4, offset = 0x4, fixed_abs, tag = 'smem constant byte address 0x4 - core index']
  #allocation1 [shape = 'u32[144,128]{1,0:T(1,128)}', space=vmem, size = 0x12000, scoped, tag = 'internal scratch']
  %s0 = inlined_call_operand.vmem [shape: f32[128,32], index: 0, kind: input, shape index: {}]
  %s1 = inlined_call_operand.vmem [shape: bf16[32,128], index: 1, kind: input, shape index: {}]
  %s2 = inlined_call_operand.vmem [shape: f32[1,128], index: 2, kind: input, shape index: {}]
  %s3 = inlined_call_operand.vmem [shape: f32[1,128], index: 3, kind: input, shape index: {}]
  %s4 = inlined_call_operand.vmem [shape: bf16[128,128], index: 4, kind: input, shape index: {}]
  %s5 = inlined_call_operand.vmem [shape: f32[1,128], index: 5, kind: input, shape index: {}]
  %s6 = inlined_call_operand.vmem [shape: f32[1,128], index: 6, kind: input, shape index: {}]
  %s7 = inlined_call_operand.vmem [shape: bf16[128,16], index: 7, kind: input, shape index: {}]
  %s8 = inlined_call_operand.vmem [shape: f32[1,16], index: 8, kind: input, shape index: {}]
  %s9 = inlined_call_operand.vmem [shape: f32[128,16], index: 9, kind: output, shape index: {}]
  %s10 = sld [smem:[#allocation0]]
  $region46: #{batch_net_forward.1} parent=0
    _
  %s12 = ssub.s32 1, %s10
  %s13 = scalar_select 0, %s12, %s10
  // Predicated region
  $region2: #{batch_net_forward.1} parent=0 // pred_check
    _
  $region3: #{batch_net_forward.1} parent=0 // pred_check_branch
    %15 = sbr.rel (0) target = $region5
  $region4: #{batch_net_forward.1} parent=0 // pred_region
    _
  $region5: #{batch_net_forward.1} parent=0 // pred_fallthru
    _
  // Predicated region
  $region6: #{batch_net_forward.1} parent=0 // pred_check
    _
  $region7: #{batch_net_forward.1} parent=0 // pred_check_branch
    %17 = sbr.rel (0) target = $region9
  $region8: #{batch_net_forward.1} parent=0 // pred_region
    _
  $region9: #{batch_net_forward.1} parent=0 // pred_fallthru
    _
  // Predicated region
  $region10: #{batch_net_forward.1} parent=0 // pred_check
    _
  $region11: #{batch_net_forward.1} parent=0 // pred_check_branch
    %19 = sbr.rel (0) target = $region13
  $region12: #{batch_net_forward.1} parent=0 // pred_region
    _
  $region13: #{batch_net_forward.1} parent=0 // pred_fallthru
    _
  // Predicated region
  $region14: #{batch_net_forward.1} parent=0 // pred_check
    _
  $region15: #{batch_net_forward.1} parent=0 // pred_check_branch
    %21 = sbr.rel (0) target = $region17
  $region16: #{batch_net_forward.1} parent=0 // pred_region
    _
  $region17: #{batch_net_forward.1} parent=0 // pred_fallthru
    _
  // Predicated region
  $region18: #{batch_net_forward.1} parent=0 // pred_check
    _
  $region19: #{batch_net_forward.1} parent=0 // pred_check_branch
    %23 = sbr.rel (0) target = $region21
  $region20: #{batch_net_forward.1} parent=0 // pred_region
    _
  $region21: #{batch_net_forward.1} parent=0 // pred_fallthru
    _
  // Predicated region
  $region22: #{batch_net_forward.1} parent=0 // pred_check
    _
  $region23: #{batch_net_forward.1} parent=0 // pred_check_branch
    %25 = sbr.rel (0) target = $region25
  $region24: #{batch_net_forward.1} parent=0 // pred_region
    _
  $region25: #{batch_net_forward.1} parent=0 // pred_fallthru
    _
  // Predicated region
  $region26: #{batch_net_forward.1} parent=0 // pred_check
    _
  $region27: #{batch_net_forward.1} parent=0 // pred_check_branch
    %27 = sbr.rel (0) target = $region29
  $region28: #{batch_net_forward.1} parent=0 // pred_region
    _
  $region29: #{batch_net_forward.1} parent=0 // pred_fallthru
    _
  // Predicated region
  $region30: #{batch_net_forward.1} parent=0 // pred_check
    _
  $region31: #{batch_net_forward.1} parent=0 // pred_check_branch
    %29 = sbr.rel (0) target = $region33
  $region32: #{batch_net_forward.1} parent=0 // pred_region
    _
  $region33: #{batch_net_forward.1} parent=0 // pred_fallthru
    _
  // Predicated region
  $region34: #{batch_net_forward.1} parent=0 // pred_check
    _
  $region35: #{batch_net_forward.1} parent=0 // pred_check_branch
    %31 = sbr.rel (0) target = $region37
  $region36: #{batch_net_forward.1} parent=0 // pred_region
    _
  $region37: #{batch_net_forward.1} parent=0 // pred_fallthru
    _
  %v33 = vld [vmem:[%s0] sm:$0xff]
  %v34 = vld [vmem:[%s0 + $0x8] sm:$0xff]
  %v35 = vld [vmem:[%s0 + $0x10] sm:$0xff]
  %v36 = vld [vmem:[%s0 + $0x18] sm:$0xff]
  %v37 = vld [vmem:[%s0 + $0x20] sm:$0xff]
  %v38 = vld [vmem:[%s0 + $0x28] sm:$0xff]
  %v39 = vld [vmem:[%s0 + $0x30] sm:$0xff]
  %v40 = vld [vmem:[%s0 + $0x38] sm:$0xff]
  %v41 = vld [vmem:[%s0 + $0x40] sm:$0xff]
  %v42 = vld [vmem:[%s0 + $0x48] sm:$0xff]
  %v43 = vld [vmem:[%s0 + $0x50] sm:$0xff]
  %v44 = vld [vmem:[%s0 + $0x58] sm:$0xff]
  %v45 = vld [vmem:[%s0 + $0x60] sm:$0xff]
  %v46 = vld [vmem:[%s0 + $0x68] sm:$0xff]
  %v47 = vld [vmem:[%s0 + $0x70] sm:$0xff]
  %v48 = vld [vmem:[%s0 + $0x78] sm:$0xff]
  %v49 = vpack.c.bf16 %v34, %v33
  %v50 = vpack.c.bf16 %v36, %v35
  %v51 = vpack.c.bf16 %v38, %v37
  %v52 = vpack.c.bf16 %v40, %v39
  %v53 = vpack.c.bf16 %v42, %v41
  %v54 = vpack.c.bf16 %v44, %v43
  %v55 = vpack.c.bf16 %v46, %v45
  %v56 = vpack.c.bf16 %v48, %v47
  %v57 = vld [vmem:[%s1] sm:$0xf]
  %v58 = vld [vmem:[%s1 + $0x4] sm:$0xf]
  %v59 = vld [vmem:[%s1 + $0x8] sm:$0xf]
  %v60 = vld [vmem:[%s1 + $0xc] sm:$0xf]
  %v65 = vunpack.c.l.b16 %v57
  %v66 = vunpack.c.l.b16 %v58
  %v67 = vunpack.c.l.b16 %v59
  %v68 = vunpack.c.l.b16 %v60
  %v69 = vpack.c.b16 %v66, %v65
  %v70 = vpack.c.b16 %v68, %v67
  %vm73 = vcmask 261120
  %v75 = vsel %vm73, %v49, 0
  %v78 = vsel %vm73, %v50, 0
  %v81 = vsel %vm73, %v51, 0
  %v84 = vsel %vm73, %v52, 0
  %v87 = vsel %vm73, %v53, 0
  %v90 = vsel %vm73, %v54, 0
  %v93 = vsel %vm73, %v55, 0
  %v96 = vsel %vm73, %v56, 0
  %98 = vmatprep.subr.bf16.mxu0 0
  %99 = vmatpush1.bf16.msra.mxu0 %v69
  %100 = vmatprep.subr.bf16.mxu0 0
  %101 = vmatpush1.bf16.msra.mxu0 %v70
  %102 = vmatprep.subr.bf16.mxu0 0
  %103 = vmatpush1.bf16.msra.mxu0 0
  %104 = vmatprep.subr.bf16.mxu0 0
  %105 = vmatpush1.bf16.msra.mxu0 0
  %106 = vmatprep.subr.bf16.mxu0 0
  %107 = vmatpush1.bf16.msra.mxu0 0
  %108 = vmatprep.subr.bf16.mxu0 0
  %109 = vmatpush1.bf16.msra.mxu0 0
  %110 = vmatprep.subr.bf16.mxu0 0
  %111 = vmatpush1.bf16.msra.mxu0 0
  %112 = vmatprep.subr.bf16.mxu0 0
  %113 = vmatpush1.bf16.msra.mxu0 0
  %114 = vmatprep.subr.bf16.mxu0 0
  %115 = vmatpush1.bf16.msra.mxu0 0
  %116 = vmatprep.subr.bf16.mxu0 0
  %117 = vmatpush1.bf16.msra.mxu0 0
  %118 = vmatprep.subr.bf16.mxu0 0
  %119 = vmatpush1.bf16.msra.mxu0 0
  %120 = vmatprep.subr.bf16.mxu0 0
  %121 = vmatpush1.bf16.msra.mxu0 0
  %122 = vmatprep.subr.bf16.mxu0 0
  %123 = vmatpush1.bf16.msra.mxu0 0
  %124 = vmatprep.subr.bf16.mxu0 0
  %125 = vmatpush1.bf16.msra.mxu0 0
  %126 = vmatprep.subr.bf16.mxu0 0
  %127 = vmatpush1.bf16.msra.mxu0 0
  %128 = vmatprep.subr.bf16.mxu0 0
  %129 = vmatpush1.bf16.msra.mxu0 0
  %130 = vmatprep.mubr.bf16.mxu0 0
  %131 = vmatmul.mubr.bf16.gmra.mrb[0].mxu0 %v75
  %v132 = vpop.f32.mrb[0].mxu0
  %v133 = vadd.f32 0.0, %v132
  %v134 = vpop.f32.mrb[0].mxu0
  %v135 = vpop.f32.mrb[0].mxu0
  %v136 = vadd.f32 0.0, %v135
  %v137 = vpop.f32.mrb[0].mxu0
  %138 = vmatprep.mubr.bf16.mxu0 0
  %139 = vmatmul.mubr.bf16.gmra.mrb[0].mxu0 %v78
  %v140 = vpop.f32.mrb[0].mxu0
  %v141 = vadd.f32 0.0, %v140
  %v142 = vpop.f32.mrb[0].mxu0
  %v143 = vpop.f32.mrb[0].mxu0
  %v144 = vadd.f32 0.0, %v143
  %v145 = vpop.f32.mrb[0].mxu0
  %146 = vmatprep.mubr.bf16.mxu0 0
  %147 = vmatmul.mubr.bf16.gmra.mrb[0].mxu0 %v81
  %v148 = vpop.f32.mrb[0].mxu0
  %v149 = vadd.f32 0.0, %v148
  %v150 = vpop.f32.mrb[0].mxu0
  %v151 = vpop.f32.mrb[0].mxu0
  %v152 = vadd.f32 0.0, %v151
  %v153 = vpop.f32.mrb[0].mxu0
  %154 = vmatprep.mubr.bf16.mxu0 0
  %155 = vmatmul.mubr.bf16.gmra.mrb[0].mxu0 %v84
  %v156 = vpop.f32.mrb[0].mxu0
  %v157 = vadd.f32 0.0, %v156
  %v158 = vpop.f32.mrb[0].mxu0
  %v159 = vpop.f32.mrb[0].mxu0
  %v160 = vadd.f32 0.0, %v159
  %v161 = vpop.f32.mrb[0].mxu0
  %162 = vmatprep.mubr.bf16.mxu0 0
  %163 = vmatmul.mubr.bf16.gmra.mrb[0].mxu0 %v87
  %v164 = vpop.f32.mrb[0].mxu0
  %v165 = vadd.f32 0.0, %v164
  %v166 = vpop.f32.mrb[0].mxu0
  %v167 = vpop.f32.mrb[0].mxu0
  %v168 = vadd.f32 0.0, %v167
  %v169 = vpop.f32.mrb[0].mxu0
  %170 = vmatprep.mubr.bf16.mxu0 0
  %171 = vmatmul.mubr.bf16.gmra.mrb[0].mxu0 %v90
  %v172 = vpop.f32.mrb[0].mxu0
  %v173 = vadd.f32 0.0, %v172
  %v174 = vpop.f32.mrb[0].mxu0
  %v175 = vpop.f32.mrb[0].mxu0
  %v176 = vadd.f32 0.0, %v175
  %v177 = vpop.f32.mrb[0].mxu0
  %178 = vmatprep.mubr.bf16.mxu0 0
  %179 = vmatmul.mubr.bf16.gmra.mrb[0].mxu0 %v93
  %v180 = vpop.f32.mrb[0].mxu0
  %v181 = vadd.f32 0.0, %v180
  %v182 = vpop.f32.mrb[0].mxu0
  %v183 = vpop.f32.mrb[0].mxu0
  %v184 = vadd.f32 0.0, %v183
  %v185 = vpop.f32.mrb[0].mxu0
  %186 = vmatprep.mubr.bf16.mxu0 0
  %187 = vmatmul.mubr.bf16.gmra.mrb[0].mxu0 %v96
  %v188 = vpop.f32.mrb[0].mxu0
  %v189 = vadd.f32 0.0, %v188
  %v190 = vpop.f32.mrb[0].mxu0
  %v191 = vpop.f32.mrb[0].mxu0
  %v192 = vadd.f32 0.0, %v191
  %v193 = vpop.f32.mrb[0].mxu0
  %194 = vdwg.mxu0
  %v195 = vld [vmem:[%s2] sm:$0x1]
  %v196 = vld [vmem:[%s3] sm:$0x1]
  %v197 = vadd.f32 %v133, %v136
  %v198 = vadd.f32 %v197, %v141
  %v199 = vadd.f32 %v198, %v144
  %v200 = vadd.f32 %v199, %v149
  %v201 = vadd.f32 %v200, %v152
  %v202 = vadd.f32 %v201, %v157
  %v203 = vadd.f32 %v202, %v160
  %v204 = vadd.f32 %v203, %v165
  %v205 = vadd.f32 %v204, %v168
  %v206 = vadd.f32 %v205, %v173
  %v207 = vadd.f32 %v206, %v176
  %v208 = vadd.f32 %v207, %v181
  %v209 = vadd.f32 %v208, %v184
  %v210 = vadd.f32 %v209, %v189
  %v211 = vadd.f32 %v210, %v192
  %v212 = vrot.slane %v211, 4
  %v213 = vadd.f32 %v211, %v212
  %v214 = vrot.slane %v213, 2
  %v215 = vadd.f32 %v213, %v214
  %v216 = vrot.slane %v215, 1
  %v217 = vadd.f32 %v215, %v216
  %v218 = vmul.f32 %v217, 0.0078125
  %v219 = vsub.f32 %v133, %v218
  %v220 = vsub.f32 %v136, %v218
  %v221 = vsub.f32 %v141, %v218
  %v222 = vsub.f32 %v144, %v218
  %v223 = vsub.f32 %v149, %v218
  %v224 = vsub.f32 %v152, %v218
  %v225 = vsub.f32 %v157, %v218
  %v226 = vsub.f32 %v160, %v218
  %v227 = vsub.f32 %v165, %v218
  %v228 = vsub.f32 %v168, %v218
  %v229 = vsub.f32 %v173, %v218
  %v230 = vsub.f32 %v176, %v218
  %v231 = vsub.f32 %v181, %v218
  %v232 = vsub.f32 %v184, %v218
  %v233 = vsub.f32 %v189, %v218
  %v234 = vsub.f32 %v192, %v218
  %v235 = vmul.f32 %v219, %v219
  %v236 = vmul.f32 %v220, %v220
  %v237 = vmul.f32 %v221, %v221
  %v238 = vmul.f32 %v222, %v222
  %v239 = vmul.f32 %v223, %v223
  %v240 = vmul.f32 %v224, %v224
  %v241 = vmul.f32 %v225, %v225
  %v242 = vmul.f32 %v226, %v226
  %v243 = vmul.f32 %v227, %v227
  %v244 = vmul.f32 %v228, %v228
  %v245 = vmul.f32 %v229, %v229
  %v246 = vmul.f32 %v230, %v230
  %v247 = vmul.f32 %v231, %v231
  %v248 = vmul.f32 %v232, %v232
  %v249 = vmul.f32 %v233, %v233
  %v250 = vmul.f32 %v234, %v234
  %v251 = vadd.f32 %v235, %v236
  %v252 = vadd.f32 %v251, %v237
  %v253 = vadd.f32 %v252, %v238
  %v254 = vadd.f32 %v253, %v239
  %v255 = vadd.f32 %v254, %v240
  %v256 = vadd.f32 %v255, %v241
  %v257 = vadd.f32 %v256, %v242
  %v258 = vadd.f32 %v257, %v243
  %v259 = vadd.f32 %v258, %v244
  %v260 = vadd.f32 %v259, %v245
  %v261 = vadd.f32 %v260, %v246
  %v262 = vadd.f32 %v261, %v247
  %v263 = vadd.f32 %v262, %v248
  %v264 = vadd.f32 %v263, %v249
  %v265 = vadd.f32 %v264, %v250
  %v266 = vrot.slane %v265, 4
  %v267 = vadd.f32 %v265, %v266
  %v268 = vrot.slane %v267, 2
  %v269 = vadd.f32 %v267, %v268
  %v270 = vrot.slane %v269, 1
  %v271 = vadd.f32 %v269, %v270
  %v272 = vmul.f32 %v271, 0.0078125
  %v273 = vadd.f32 %v272, 1e-05
  %v274 = vrsqrt.pop %v273
  %v275 = vmul.f32 %v195, %v274
  %v277 = vlaneseq
  %v278 = vshrl.u32 %v277, 7
  %v279 = vsub.s32 0, %v278
  %v280 = vrot.slane %v275, %v279
  %v282 = vmul.f32 %v219, %v280
  %v283 = vmul.f32 %v220, %v280
  %v284 = vmul.f32 %v221, %v280
  %v285 = vmul.f32 %v222, %v280
  %v286 = vmul.f32 %v223, %v280
  %v287 = vmul.f32 %v224, %v280
  %v288 = vmul.f32 %v225, %v280
  %v289 = vmul.f32 %v226, %v280
  %v290 = vmul.f32 %v227, %v280
  %v291 = vmul.f32 %v228, %v280
  %v292 = vmul.f32 %v229, %v280
  %v293 = vmul.f32 %v230, %v280
  %v294 = vmul.f32 %v231, %v280
  %v295 = vmul.f32 %v232, %v280
  %v296 = vmul.f32 %v233, %v280
  %v297 = vmul.f32 %v234, %v280
  %v299 = vlaneseq
  %v300 = vshrl.u32 %v299, 7
  %v301 = vsub.s32 0, %v300
  %v302 = vrot.slane %v196, %v301
  %v304 = vadd.f32 %v282, %v302
  %v305 = vadd.f32 %v283, %v302
  %v306 = vadd.f32 %v284, %v302
  %v307 = vadd.f32 %v285, %v302
  %v308 = vadd.f32 %v286, %v302
  %v309 = vadd.f32 %v287, %v302
  %v310 = vadd.f32 %v288, %v302
  %v311 = vadd.f32 %v289, %v302
  %v312 = vadd.f32 %v290, %v302
  %v313 = vadd.f32 %v291, %v302
  %v314 = vadd.f32 %v292, %v302
  %v315 = vadd.f32 %v293, %v302
  %v316 = vadd.f32 %v294, %v302
  %v317 = vadd.f32 %v295, %v302
  %v318 = vadd.f32 %v296, %v302
  %v319 = vadd.f32 %v297, %v302
  %v320 = vmax.f32 %v304, 0.0
  %v321 = vmax.f32 %v305, 0.0
  %v322 = vmax.f32 %v306, 0.0
  %v323 = vmax.f32 %v307, 0.0
  %v324 = vmax.f32 %v308, 0.0
  %v325 = vmax.f32 %v309, 0.0
  %v326 = vmax.f32 %v310, 0.0
  %v327 = vmax.f32 %v311, 0.0
  %v328 = vmax.f32 %v312, 0.0
  %v329 = vmax.f32 %v313, 0.0
  %v330 = vmax.f32 %v314, 0.0
  %v331 = vmax.f32 %v315, 0.0
  %v332 = vmax.f32 %v316, 0.0
  %v333 = vmax.f32 %v317, 0.0
  %v334 = vmax.f32 %v318, 0.0
  %v335 = vmax.f32 %v319, 0.0
  %v336 = vpack.c.bf16 %v321, %v320
  %v337 = vpack.c.bf16 %v323, %v322
  %v338 = vpack.c.bf16 %v325, %v324
  %v339 = vpack.c.bf16 %v327, %v326
  %v340 = vpack.c.bf16 %v329, %v328
  %v341 = vpack.c.bf16 %v331, %v330
  %v342 = vpack.c.bf16 %v333, %v332
  %v343 = vpack.c.bf16 %v335, %v334
  %v344 = vld [vmem:[%s4] sm:$0xf]
  %v345 = vld [vmem:[%s4 + $0x4] sm:$0xf]
  %v346 = vld [vmem:[%s4 + $0x8] sm:$0xf]
  %v347 = vld [vmem:[%s4 + $0xc] sm:$0xf]
  %v348 = vld [vmem:[%s4 + $0x10] sm:$0xf]
  %v349 = vld [vmem:[%s4 + $0x14] sm:$0xf]
  %v350 = vld [vmem:[%s4 + $0x18] sm:$0xf]
  %v351 = vld [vmem:[%s4 + $0x1c] sm:$0xf]
  %v352 = vld [vmem:[%s4 + $0x20] sm:$0xf]
  %v353 = vld [vmem:[%s4 + $0x24] sm:$0xf]
  %v354 = vld [vmem:[%s4 + $0x28] sm:$0xf]
  %v355 = vld [vmem:[%s4 + $0x2c] sm:$0xf]
  %v356 = vld [vmem:[%s4 + $0x30] sm:$0xf]
  %v357 = vld [vmem:[%s4 + $0x34] sm:$0xf]
  %v358 = vld [vmem:[%s4 + $0x38] sm:$0xf]
  %v359 = vld [vmem:[%s4 + $0x3c] sm:$0xf]
  %v376 = vunpack.c.l.b16 %v344
  %v377 = vunpack.c.l.b16 %v345
  %v378 = vunpack.c.l.b16 %v346
  %v379 = vunpack.c.l.b16 %v347
  %v380 = vunpack.c.l.b16 %v348
  %v381 = vunpack.c.l.b16 %v349
  %v382 = vunpack.c.l.b16 %v350
  %v383 = vunpack.c.l.b16 %v351
  %v384 = vunpack.c.l.b16 %v352
  %v385 = vunpack.c.l.b16 %v353
  %v386 = vunpack.c.l.b16 %v354
  %v387 = vunpack.c.l.b16 %v355
  %v388 = vunpack.c.l.b16 %v356
  %v389 = vunpack.c.l.b16 %v357
  %v390 = vunpack.c.l.b16 %v358
  %v391 = vunpack.c.l.b16 %v359
  %v392 = vpack.c.b16 %v377, %v376
  %v393 = vpack.c.b16 %v379, %v378
  %v394 = vpack.c.b16 %v381, %v380
  %v395 = vpack.c.b16 %v383, %v382
  %v396 = vpack.c.b16 %v385, %v384
  %v397 = vpack.c.b16 %v387, %v386
  %v398 = vpack.c.b16 %v389, %v388
  %v399 = vpack.c.b16 %v391, %v390
  %408 = vmatprep.subr.bf16.mxu0 0
  %409 = vmatpush1.bf16.msra.mxu0 %v392
  %410 = vmatprep.subr.bf16.mxu0 0
  %411 = vmatpush1.bf16.msra.mxu0 %v393
  %412 = vmatprep.subr.bf16.mxu0 0
  %413 = vmatpush1.bf16.msra.mxu0 %v394
  %414 = vmatprep.subr.bf16.mxu0 0
  %415 = vmatpush1.bf16.msra.mxu0 %v395
  %416 = vmatprep.subr.bf16.mxu0 0
  %417 = vmatpush1.bf16.msra.mxu0 %v396
  %418 = vmatprep.subr.bf16.mxu0 0
  %419 = vmatpush1.bf16.msra.mxu0 %v397
  %420 = vmatprep.subr.bf16.mxu0 0
  %421 = vmatpush1.bf16.msra.mxu0 %v398
  %422 = vmatprep.subr.bf16.mxu0 0
  %423 = vmatpush1.bf16.msra.mxu0 %v399
  %424 = vmatprep.subr.bf16.mxu0 0
  %425 = vmatpush1.bf16.msra.mxu0 0
  %426 = vmatprep.subr.bf16.mxu0 0
  %427 = vmatpush1.bf16.msra.mxu0 0
  %428 = vmatprep.subr.bf16.mxu0 0
  %429 = vmatpush1.bf16.msra.mxu0 0
  %430 = vmatprep.subr.bf16.mxu0 0
  %431 = vmatpush1.bf16.msra.mxu0 0
  %432 = vmatprep.subr.bf16.mxu0 0
  %433 = vmatpush1.bf16.msra.mxu0 0
  %434 = vmatprep.subr.bf16.mxu0 0
  %435 = vmatpush1.bf16.msra.mxu0 0
  %436 = vmatprep.subr.bf16.mxu0 0
  %437 = vmatpush1.bf16.msra.mxu0 0
  %438 = vmatprep.subr.bf16.mxu0 0
  %439 = vmatpush1.bf16.msra.mxu0 0
  %440 = vmatprep.mubr.bf16.mxu0 0
  %441 = vmatmul.mubr.bf16.gmra.mrb[0].mxu0 %v336
  %v442 = vpop.f32.mrb[0].mxu0
  %v443 = vadd.f32 0.0, %v442
  %v444 = vpop.f32.mrb[0].mxu0
  %v445 = vpop.f32.mrb[0].mxu0
  %v446 = vadd.f32 0.0, %v445
  %v447 = vpop.f32.mrb[0].mxu0
  %448 = vmatprep.mubr.bf16.mxu0 0
  %449 = vmatmul.mubr.bf16.gmra.mrb[0].mxu0 %v337
  %v450 = vpop.f32.mrb[0].mxu0
  %v451 = vadd.f32 0.0, %v450
  %v452 = vpop.f32.mrb[0].mxu0
  %v453 = vpop.f32.mrb[0].mxu0
  %v454 = vadd.f32 0.0, %v453
  %v455 = vpop.f32.mrb[0].mxu0
  %456 = vmatprep.mubr.bf16.mxu0 0
  %457 = vmatmul.mubr.bf16.gmra.mrb[0].mxu0 %v338
  %v458 = vpop.f32.mrb[0].mxu0
  %v459 = vadd.f32 0.0, %v458
  %v460 = vpop.f32.mrb[0].mxu0
  %v461 = vpop.f32.mrb[0].mxu0
  %v462 = vadd.f32 0.0, %v461
  %v463 = vpop.f32.mrb[0].mxu0
  %464 = vmatprep.mubr.bf16.mxu0 0
  %465 = vmatmul.mubr.bf16.gmra.mrb[0].mxu0 %v339
  %v466 = vpop.f32.mrb[0].mxu0
  %v467 = vadd.f32 0.0, %v466
  %v468 = vpop.f32.mrb[0].mxu0
  %v469 = vpop.f32.mrb[0].mxu0
  %v470 = vadd.f32 0.0, %v469
  %v471 = vpop.f32.mrb[0].mxu0
  %472 = vmatprep.mubr.bf16.mxu0 0
  %473 = vmatmul.mubr.bf16.gmra.mrb[0].mxu0 %v340
  %v474 = vpop.f32.mrb[0].mxu0
  %v475 = vadd.f32 0.0, %v474
  %v476 = vpop.f32.mrb[0].mxu0
  %v477 = vpop.f32.mrb[0].mxu0
  %v478 = vadd.f32 0.0, %v477
  %v479 = vpop.f32.mrb[0].mxu0
  %480 = vmatprep.mubr.bf16.mxu0 0
  %481 = vmatmul.mubr.bf16.gmra.mrb[0].mxu0 %v341
  %v482 = vpop.f32.mrb[0].mxu0
  %v483 = vadd.f32 0.0, %v482
  %v484 = vpop.f32.mrb[0].mxu0
  %v485 = vpop.f32.mrb[0].mxu0
  %v486 = vadd.f32 0.0, %v485
  %v487 = vpop.f32.mrb[0].mxu0
  %488 = vmatprep.mubr.bf16.mxu0 0
  %489 = vmatmul.mubr.bf16.gmra.mrb[0].mxu0 %v342
  %v490 = vpop.f32.mrb[0].mxu0
  %v491 = vadd.f32 0.0, %v490
  %v492 = vpop.f32.mrb[0].mxu0
  %v493 = vpop.f32.mrb[0].mxu0
  %v494 = vadd.f32 0.0, %v493
  %v495 = vpop.f32.mrb[0].mxu0
  %496 = vmatprep.mubr.bf16.mxu0 0
  %497 = vmatmul.mubr.bf16.gmra.mrb[0].mxu0 %v343
  %v498 = vpop.f32.mrb[0].mxu0
  %v499 = vadd.f32 0.0, %v498
  %v500 = vpop.f32.mrb[0].mxu0
  %v501 = vpop.f32.mrb[0].mxu0
  %v502 = vadd.f32 0.0, %v501
  %v503 = vpop.f32.mrb[0].mxu0
  %504 = vdwg.mxu0
  %v505 = vld [vmem:[%s5] sm:$0x1]
  %v506 = vld [vmem:[%s6] sm:$0x1]
  %v507 = vadd.f32 %v443, %v446
  %v508 = vadd.f32 %v507, %v451
  %v509 = vadd.f32 %v508, %v454
  %v510 = vadd.f32 %v509, %v459
  %v511 = vadd.f32 %v510, %v462
  %v512 = vadd.f32 %v511, %v467
  %v513 = vadd.f32 %v512, %v470
  %v514 = vadd.f32 %v513, %v475
  %v515 = vadd.f32 %v514, %v478
  %v516 = vadd.f32 %v515, %v483
  %v517 = vadd.f32 %v516, %v486
  %v518 = vadd.f32 %v517, %v491
  %v519 = vadd.f32 %v518, %v494
  %v520 = vadd.f32 %v519, %v499
  %v521 = vadd.f32 %v520, %v502
  %v522 = vrot.slane %v521, 4
  %v523 = vadd.f32 %v521, %v522
  %v524 = vrot.slane %v523, 2
  %v525 = vadd.f32 %v523, %v524
  %v526 = vrot.slane %v525, 1
  %v527 = vadd.f32 %v525, %v526
  %v528 = vmul.f32 %v527, 0.0078125
  %v529 = vsub.f32 %v443, %v528
  %v530 = vsub.f32 %v446, %v528
  %v531 = vsub.f32 %v451, %v528
  %v532 = vsub.f32 %v454, %v528
  %v533 = vsub.f32 %v459, %v528
  %v534 = vsub.f32 %v462, %v528
  %v535 = vsub.f32 %v467, %v528
  %v536 = vsub.f32 %v470, %v528
  %v537 = vsub.f32 %v475, %v528
  %v538 = vsub.f32 %v478, %v528
  %v539 = vsub.f32 %v483, %v528
  %v540 = vsub.f32 %v486, %v528
  %v541 = vsub.f32 %v491, %v528
  %v542 = vsub.f32 %v494, %v528
  %v543 = vsub.f32 %v499, %v528
  %v544 = vsub.f32 %v502, %v528
  %v545 = vmul.f32 %v529, %v529
  %v546 = vmul.f32 %v530, %v530
  %v547 = vmul.f32 %v531, %v531
  %v548 = vmul.f32 %v532, %v532
  %v549 = vmul.f32 %v533, %v533
  %v550 = vmul.f32 %v534, %v534
  %v551 = vmul.f32 %v535, %v535
  %v552 = vmul.f32 %v536, %v536
  %v553 = vmul.f32 %v537, %v537
  %v554 = vmul.f32 %v538, %v538
  %v555 = vmul.f32 %v539, %v539
  %v556 = vmul.f32 %v540, %v540
  %v557 = vmul.f32 %v541, %v541
  %v558 = vmul.f32 %v542, %v542
  %v559 = vmul.f32 %v543, %v543
  %v560 = vmul.f32 %v544, %v544
  %v561 = vadd.f32 %v545, %v546
  %v562 = vadd.f32 %v561, %v547
  %v563 = vadd.f32 %v562, %v548
  %v564 = vadd.f32 %v563, %v549
  %v565 = vadd.f32 %v564, %v550
  %v566 = vadd.f32 %v565, %v551
  %v567 = vadd.f32 %v566, %v552
  %v568 = vadd.f32 %v567, %v553
  %v569 = vadd.f32 %v568, %v554
  %v570 = vadd.f32 %v569, %v555
  %v571 = vadd.f32 %v570, %v556
  %v572 = vadd.f32 %v571, %v557
  %v573 = vadd.f32 %v572, %v558
  %v574 = vadd.f32 %v573, %v559
  %v575 = vadd.f32 %v574, %v560
  %v576 = vrot.slane %v575, 4
  %v577 = vadd.f32 %v575, %v576
  %v578 = vrot.slane %v577, 2
  %v579 = vadd.f32 %v577, %v578
  %v580 = vrot.slane %v579, 1
  %v581 = vadd.f32 %v579, %v580
  %v582 = vmul.f32 %v581, 0.0078125
  %v583 = vadd.f32 %v582, 1e-05
  %v584 = vrsqrt.pop %v583
  %v585 = vmul.f32 %v505, %v584
  %v587 = vlaneseq
  %v588 = vshrl.u32 %v587, 7
  %v589 = vsub.s32 0, %v588
  %v590 = vrot.slane %v585, %v589
  %v592 = vmul.f32 %v529, %v590
  %v593 = vmul.f32 %v530, %v590
  %v594 = vmul.f32 %v531, %v590
  %v595 = vmul.f32 %v532, %v590
  %v596 = vmul.f32 %v533, %v590
  %v597 = vmul.f32 %v534, %v590
  %v598 = vmul.f32 %v535, %v590
  %v599 = vmul.f32 %v536, %v590
  %v600 = vmul.f32 %v537, %v590
  %v601 = vmul.f32 %v538, %v590
  %v602 = vmul.f32 %v539, %v590
  %v603 = vmul.f32 %v540, %v590
  %v604 = vmul.f32 %v541, %v590
  %v605 = vmul.f32 %v542, %v590
  %v606 = vmul.f32 %v543, %v590
  %v607 = vmul.f32 %v544, %v590
  %v609 = vlaneseq
  %v610 = vshrl.u32 %v609, 7
  %v611 = vsub.s32 0, %v610
  %v612 = vrot.slane %v506, %v611
  %v614 = vadd.f32 %v592, %v612
  %v615 = vadd.f32 %v593, %v612
  %v616 = vadd.f32 %v594, %v612
  %v617 = vadd.f32 %v595, %v612
  %v618 = vadd.f32 %v596, %v612
  %v619 = vadd.f32 %v597, %v612
  %v620 = vadd.f32 %v598, %v612
  %v621 = vadd.f32 %v599, %v612
  %v622 = vadd.f32 %v600, %v612
  %v623 = vadd.f32 %v601, %v612
  %v624 = vadd.f32 %v602, %v612
  %v625 = vadd.f32 %v603, %v612
  %v626 = vadd.f32 %v604, %v612
  %v627 = vadd.f32 %v605, %v612
  %v628 = vadd.f32 %v606, %v612
  %v629 = vadd.f32 %v607, %v612
  %v630 = vmax.f32 %v614, 0.0
  %v631 = vmax.f32 %v615, 0.0
  %v632 = vmax.f32 %v616, 0.0
  %v633 = vmax.f32 %v617, 0.0
  %v634 = vmax.f32 %v618, 0.0
  %v635 = vmax.f32 %v619, 0.0
  %v636 = vmax.f32 %v620, 0.0
  %v637 = vmax.f32 %v621, 0.0
  %v638 = vmax.f32 %v622, 0.0
  %v639 = vmax.f32 %v623, 0.0
  %v640 = vmax.f32 %v624, 0.0
  %v641 = vmax.f32 %v625, 0.0
  %v642 = vmax.f32 %v626, 0.0
  %v643 = vmax.f32 %v627, 0.0
  %v644 = vmax.f32 %v628, 0.0
  %v645 = vmax.f32 %v629, 0.0
  %v646 = vpack.c.bf16 %v631, %v630
  %v647 = vpack.c.bf16 %v633, %v632
  %v648 = vpack.c.bf16 %v635, %v634
  %v649 = vpack.c.bf16 %v637, %v636
  %v650 = vpack.c.bf16 %v639, %v638
  %v651 = vpack.c.bf16 %v641, %v640
  %v652 = vpack.c.bf16 %v643, %v642
  %v653 = vpack.c.bf16 %v645, %v644
  %v654 = vld [vmem:[%s7] sm:$0xf]
  %v655 = vld [vmem:[%s7 + $0x4] sm:$0xf]
  %v656 = vld [vmem:[%s7 + $0x8] sm:$0xf]
  %v657 = vld [vmem:[%s7 + $0xc] sm:$0xf]
  %v658 = vld [vmem:[%s7 + $0x10] sm:$0xf]
  %v659 = vld [vmem:[%s7 + $0x14] sm:$0xf]
  %v660 = vld [vmem:[%s7 + $0x18] sm:$0xf]
  %v661 = vld [vmem:[%s7 + $0x1c] sm:$0xf]
  %v662 = vld [vmem:[%s7 + $0x20] sm:$0xf]
  %v663 = vld [vmem:[%s7 + $0x24] sm:$0xf]
  %v664 = vld [vmem:[%s7 + $0x28] sm:$0xf]
  %v665 = vld [vmem:[%s7 + $0x2c] sm:$0xf]
  %v666 = vld [vmem:[%s7 + $0x30] sm:$0xf]
  %v667 = vld [vmem:[%s7 + $0x34] sm:$0xf]
  %v668 = vld [vmem:[%s7 + $0x38] sm:$0xf]
  %v669 = vld [vmem:[%s7 + $0x3c] sm:$0xf]
  %v670 = vld [vmem:[%s8] sm:$0x1]
  %v672 = vlaneseq
  %v673 = vshrl.u32 %v672, 7
  %v674 = vsub.s32 0, %v673
  %v675 = vrot.slane %v670, %v674
  %v693 = vunpack.c.l.b16 %v654
  %v694 = vunpack.c.l.b16 %v655
  %v695 = vunpack.c.l.b16 %v656
  %v696 = vunpack.c.l.b16 %v657
  %v697 = vunpack.c.l.b16 %v658
  %v698 = vunpack.c.l.b16 %v659
  %v699 = vunpack.c.l.b16 %v660
  %v700 = vunpack.c.l.b16 %v661
  %v701 = vunpack.c.l.b16 %v662
  %v702 = vunpack.c.l.b16 %v663
  %v703 = vunpack.c.l.b16 %v664
  %v704 = vunpack.c.l.b16 %v665
  %v705 = vunpack.c.l.b16 %v666
  %v706 = vunpack.c.l.b16 %v667
  %v707 = vunpack.c.l.b16 %v668
  %v708 = vunpack.c.l.b16 %v669
  %v709 = vpack.c.b16 %v694, %v693
  %v710 = vpack.c.b16 %v696, %v695
  %v711 = vpack.c.b16 %v698, %v697
  %v712 = vpack.c.b16 %v700, %v699
  %v713 = vpack.c.b16 %v702, %v701
  %v714 = vpack.c.b16 %v704, %v703
  %v715 = vpack.c.b16 %v706, %v705
  %v716 = vpack.c.b16 %v708, %v707
  %725 = vmatprep.subr.bf16.mxu0 0
  %726 = vmatpush1.bf16.msra.mxu0 %v709
  %727 = vmatprep.subr.bf16.mxu0 0
  %728 = vmatpush1.bf16.msra.mxu0 %v710
  %729 = vmatprep.subr.bf16.mxu0 0
  %730 = vmatpush1.bf16.msra.mxu0 %v711
  %731 = vmatprep.subr.bf16.mxu0 0
  %732 = vmatpush1.bf16.msra.mxu0 %v712
  %733 = vmatprep.subr.bf16.mxu0 0
  %734 = vmatpush1.bf16.msra.mxu0 %v713
  %735 = vmatprep.subr.bf16.mxu0 0
  %736 = vmatpush1.bf16.msra.mxu0 %v714
  %737 = vmatprep.subr.bf16.mxu0 0
  %738 = vmatpush1.bf16.msra.mxu0 %v715
  %739 = vmatprep.subr.bf16.mxu0 0
  %740 = vmatpush1.bf16.msra.mxu0 %v716
  %741 = vmatprep.subr.bf16.mxu0 0
  %742 = vmatpush1.bf16.msra.mxu0 0
  %743 = vmatprep.subr.bf16.mxu0 0
  %744 = vmatpush1.bf16.msra.mxu0 0
  %745 = vmatprep.subr.bf16.mxu0 0
  %746 = vmatpush1.bf16.msra.mxu0 0
  %747 = vmatprep.subr.bf16.mxu0 0
  %748 = vmatpush1.bf16.msra.mxu0 0
  %749 = vmatprep.subr.bf16.mxu0 0
  %750 = vmatpush1.bf16.msra.mxu0 0
  %751 = vmatprep.subr.bf16.mxu0 0
  %752 = vmatpush1.bf16.msra.mxu0 0
  %753 = vmatprep.subr.bf16.mxu0 0
  %754 = vmatpush1.bf16.msra.mxu0 0
  %755 = vmatprep.subr.bf16.mxu0 0
  %756 = vmatpush1.bf16.msra.mxu0 0
  %757 = vmatprep.mubr.bf16.mxu0 0
  %758 = vmatmul.mubr.bf16.gmra.mrb[0].mxu0 %v646
  %v759 = vpop.f32.mrb[0].mxu0
  %v760 = vadd.f32 %v675, %v759
  %v761 = vpop.f32.mrb[0].mxu0
  %v762 = vpop.f32.mrb[0].mxu0
  %v763 = vadd.f32 %v675, %v762
  %v764 = vpop.f32.mrb[0].mxu0
  %765 = vmatprep.mubr.bf16.mxu0 0
  %766 = vmatmul.mubr.bf16.gmra.mrb[0].mxu0 %v647
  %v767 = vpop.f32.mrb[0].mxu0
  %v768 = vadd.f32 %v675, %v767
  %v769 = vpop.f32.mrb[0].mxu0
  %v770 = vpop.f32.mrb[0].mxu0
  %v771 = vadd.f32 %v675, %v770
  %v772 = vpop.f32.mrb[0].mxu0
  %773 = vmatprep.mubr.bf16.mxu0 0
  %774 = vmatmul.mubr.bf16.gmra.mrb[0].mxu0 %v648
  %v775 = vpop.f32.mrb[0].mxu0
  %v776 = vadd.f32 %v675, %v775
  %v777 = vpop.f32.mrb[0].mxu0
  %v778 = vpop.f32.mrb[0].mxu0
  %v779 = vadd.f32 %v675, %v778
  %v780 = vpop.f32.mrb[0].mxu0
  %781 = vmatprep.mubr.bf16.mxu0 0
  %782 = vmatmul.mubr.bf16.gmra.mrb[0].mxu0 %v649
  %v783 = vpop.f32.mrb[0].mxu0
  %v784 = vadd.f32 %v675, %v783
  %v785 = vpop.f32.mrb[0].mxu0
  %v786 = vpop.f32.mrb[0].mxu0
  %v787 = vadd.f32 %v675, %v786
  %v788 = vpop.f32.mrb[0].mxu0
  %789 = vmatprep.mubr.bf16.mxu0 0
  %790 = vmatmul.mubr.bf16.gmra.mrb[0].mxu0 %v650
  %v791 = vpop.f32.mrb[0].mxu0
  %v792 = vadd.f32 %v675, %v791
  %v793 = vpop.f32.mrb[0].mxu0
  %v794 = vpop.f32.mrb[0].mxu0
  %v795 = vadd.f32 %v675, %v794
  %v796 = vpop.f32.mrb[0].mxu0
  %797 = vmatprep.mubr.bf16.mxu0 0
  %798 = vmatmul.mubr.bf16.gmra.mrb[0].mxu0 %v651
  %v799 = vpop.f32.mrb[0].mxu0
  %v800 = vadd.f32 %v675, %v799
  %v801 = vpop.f32.mrb[0].mxu0
  %v802 = vpop.f32.mrb[0].mxu0
  %v803 = vadd.f32 %v675, %v802
  %v804 = vpop.f32.mrb[0].mxu0
  %805 = vmatprep.mubr.bf16.mxu0 0
  %806 = vmatmul.mubr.bf16.gmra.mrb[0].mxu0 %v652
  %v807 = vpop.f32.mrb[0].mxu0
  %v808 = vadd.f32 %v675, %v807
  %v809 = vpop.f32.mrb[0].mxu0
  %v810 = vpop.f32.mrb[0].mxu0
  %v811 = vadd.f32 %v675, %v810
  %v812 = vpop.f32.mrb[0].mxu0
  %813 = vmatprep.mubr.bf16.mxu0 0
  %814 = vmatmul.mubr.bf16.gmra.mrb[0].mxu0 %v653
  %v815 = vpop.f32.mrb[0].mxu0
  %v816 = vadd.f32 %v675, %v815
  %v817 = vpop.f32.mrb[0].mxu0
  %v818 = vpop.f32.mrb[0].mxu0
  %v819 = vadd.f32 %v675, %v818
  %v820 = vpop.f32.mrb[0].mxu0
  %821 = vdwg.mxu0
  %vm822 = vcmask 130048
  %823 = vst.msk [vmem:[%s9] sm:$0xff] %vm822, %v760
  %824 = vst.msk [vmem:[%s9 + $0x8] sm:$0xff] %vm822, %v763
  %825 = vst.msk [vmem:[%s9 + $0x10] sm:$0xff] %vm822, %v768
  %826 = vst.msk [vmem:[%s9 + $0x18] sm:$0xff] %vm822, %v771
  %827 = vst.msk [vmem:[%s9 + $0x20] sm:$0xff] %vm822, %v776
  %828 = vst.msk [vmem:[%s9 + $0x28] sm:$0xff] %vm822, %v779
  %829 = vst.msk [vmem:[%s9 + $0x30] sm:$0xff] %vm822, %v784
  %830 = vst.msk [vmem:[%s9 + $0x38] sm:$0xff] %vm822, %v787
  %831 = vst.msk [vmem:[%s9 + $0x40] sm:$0xff] %vm822, %v792
  %832 = vst.msk [vmem:[%s9 + $0x48] sm:$0xff] %vm822, %v795
  %833 = vst.msk [vmem:[%s9 + $0x50] sm:$0xff] %vm822, %v800
  %834 = vst.msk [vmem:[%s9 + $0x58] sm:$0xff] %vm822, %v803
  %835 = vst.msk [vmem:[%s9 + $0x60] sm:$0xff] %vm822, %v808
  %836 = vst.msk [vmem:[%s9 + $0x68] sm:$0xff] %vm822, %v811
  %837 = vst.msk [vmem:[%s9 + $0x70] sm:$0xff] %vm822, %v816
  %838 = vst.msk [vmem:[%s9 + $0x78] sm:$0xff] %vm822, %v819
  // Predicated region
  $region38: #{batch_net_forward.1} parent=0 // pred_check
    _
  $region39: #{batch_net_forward.1} parent=0 // pred_check_branch
    %840 = sbr.rel (0) target = $region41
  $region40: #{batch_net_forward.1} parent=0 // pred_region
    _
  $region41: #{batch_net_forward.1} parent=0 // pred_fallthru
    _
  // Predicated region
  $region42: #{batch_net_forward.1} parent=0 // pred_check
    _
  $region43: #{batch_net_forward.1} parent=0 // pred_check_branch
    %842 = sbr.rel (0) target = $region45
  $region44: #{batch_net_forward.1} parent=0 // pred_region
    _
  $region45: #{batch_net_forward.1} parent=0 // pred_fallthru
    _

</llo_original>
